<compile_context>
chip_gen: v7x
topology: tpu7x:2x2x1
jax: 0.10.0
libtpu: 0.0.40
codegen_flags: <defaults>
</compile_context>

<pallas_src>
import jax
import jax.numpy as jnp
from jax.experimental import pallas as pl
from jax.experimental.pallas import tpu as pltpu

_LANE = 128
_TARGET_BLOCK_BYTES = 4 * 1024 * 1024   # per input per block (double-buffered)
_MIN_PALLAS_ELEMENTS = 1 << 20          # below this, plain XLA reduction wins


def _round_up(x, m):
    return ((x + m - 1) // m) * m


def _make_dice_kernel(block_rows, blocks_per_split, valid_rows, needs_mask):
    folded = block_rows // 8

    def kernel(x_ref, y_ref, acc_ref):
        # acc_ref: (2, 8, 128) f32 output block, resident across the inner
        # (reduction) grid axis; acc_ref[0] accumulates x*y, acc_ref[1]
        # accumulates x*x + y*y.
        i = pl.program_id(1)

        @pl.when(i == 0)
        def _init():
            acc_ref[...] = jnp.zeros_like(acc_ref)

        x = x_ref[...].astype(jnp.float32)
        y = y_ref[...].astype(jnp.float32)

        def accumulate(xv, yv):
            # Fold rows into (8,128) vreg-shaped partials: pure VPU adds, no
            # cross-lane (XLU) reduction inside the pipelined loop.
            xr = xv.reshape(folded, 8, _LANE)
            yr = yv.reshape(folded, 8, _LANE)
            acc_ref[0] += jnp.sum(xr * yr, axis=0)
            acc_ref[1] += jnp.sum(xr * xr + yr * yr, axis=0)

        if needs_mask:
            s = pl.program_id(0)
            base_row = (s * blocks_per_split + i) * block_rows
            is_partial = base_row + block_rows > valid_rows

            # Full blocks: no iota / compare / where on the hot path.
            @pl.when(jnp.logical_not(is_partial))
            def _full():
                accumulate(x, y)

            # Only the single partial tail block pays for the row mask.
            @pl.when(is_partial)
            def _partial():
                row_ids = base_row + jax.lax.broadcasted_iota(
                    jnp.int32, (block_rows, _LANE), 0)
                valid = row_ids < valid_rows
                # Zero BEFORE all products so garbage rows cannot contaminate.
                accumulate(jnp.where(valid, x, 0.0), jnp.where(valid, y, 0.0))
        else:
            accumulate(x, y)

    return kernel


def dice_coeff(inp, target, *, min_pallas_elements=_MIN_PALLAS_ELEMENTS):
    """Pallas implementation of DiceCoeff.forward. Returns a scalar float32."""
    x = inp.reshape(-1)
    y = target.reshape(-1)
    assert x.shape == y.shape, "input and target must have same length"
    n = x.shape[0]

    # Small-input fast path: pallas_call launch + pipeline warm-up dominates
    # below ~1M elements; XLA's fused reduction is faster and simpler there.
    if n < min_pallas_elements:
        xf = x.astype(jnp.float32)
        yf = y.astype(jnp.float32)
        inter = jnp.dot(xf, yf) + 0.0001
        union = jnp.sum(xf * xf) + jnp.sum(yf * yf) + 0.0001
        return (2.0 * inter / union).astype(jnp.float32)

    itemsize = max(x.dtype.itemsize, y.dtype.itemsize)
    sub = max(8, 32 // itemsize)   # sublane packing: 8 f32, 16 bf16, 32 int8

    # Only a sub-128-element tail ever gets padded; padded zeros contribute
    # nothing to inter/union so no correction is needed.
    pad = (-n) % _LANE
    if pad:
        x = jnp.pad(x, (0, pad))
        y = jnp.pad(y, (0, pad))
    rows = (n + pad) // _LANE
    x2 = x.reshape(rows, _LANE)
    y2 = y.reshape(rows, _LANE)

    # Block sizing: ~_TARGET_BLOCK_BYTES per input per block, rounded to the
    # dtype's sublane packing; force an even total block count whenever rows
    # allow it so the "parallel" axis 2-way splits across v7x's TensorCores.
    max_rows = max(sub, (_TARGET_BLOCK_BYTES // (_LANE * itemsize)) // sub * sub)
    nblocks = pl.cdiv(rows, max_rows)
    if nblocks % 2 == 1 and rows > sub:
        nblocks += 1
    block_rows = min(max_rows, _round_up(pl.cdiv(rows, nblocks), sub))
    # Every block must overlap at least one valid row (no fully-OOB blocks).
    while nblocks > 1 and (nblocks - 1) * block_rows >= rows:
        nblocks -= 1

    nsplit = 2 if nblocks % 2 == 0 else 1
    blocks_per_split = nblocks // nsplit
    needs_mask = (nblocks * block_rows != rows)

    kernel = _make_dice_kernel(block_rows, blocks_per_split, rows, needs_mask)

    cost = pl.CostEstimate(
        flops=6 * n,                 # 3 mults + ~3 adds per element
        transcendentals=0,
        bytes_accessed=2 * n * itemsize + nsplit * 2 * 8 * _LANE * 4,
    )

    acc = pl.pallas_call(
        kernel,
        out_shape=jax.ShapeDtypeStruct((nsplit, 2, 8, _LANE), jnp.float32),
        grid_spec=pltpu.PrefetchScalarGridSpec(
            num_scalar_prefetch=0,
            grid=(nsplit, blocks_per_split),
            in_specs=[
                pl.BlockSpec((block_rows, _LANE),
                             lambda s, i: (s * blocks_per_split + i, 0)),
                pl.BlockSpec((block_rows, _LANE),
                             lambda s, i: (s * blocks_per_split + i, 0)),
            ],
            out_specs=pl.BlockSpec((None, 2, 8, _LANE),
                                   lambda s, i: (s, 0, 0, 0)),
        ),
        compiler_params=pltpu.CompilerParams(
            dimension_semantics=("parallel", "arbitrary"),
            vmem_limit_bytes=32 * 1024 * 1024,
        ),
        cost_estimate=cost,
    )(x2, y2)

    sums = jnp.sum(acc, axis=(0, 2, 3))       # (2,): [sum(x*y), sum(x^2+y^2)]
    inter = sums[0] + 0.0001
    union = sums[1] + 0.0001
    return (2.0 * inter / union).astype(jnp.float32)


def _reference(x, y):
    xf = x.reshape(-1).astype(jnp.float32)
    yf = y.reshape(-1).astype(jnp.float32)
    inter = jnp.dot(xf, yf) + 0.0001
    union = jnp.sum(xf ** 2) + jnp.sum(yf ** 2) + 0.0001
    return 2.0 * inter / union


if __name__ == "__main__":
    key = jax.random.PRNGKey(0)

    def run_case(key, shape, dtype, force_pallas, rtol, label):
        k1, k2 = jax.random.split(key)
        xf = jax.nn.sigmoid(jax.random.normal(k1, shape, dtype=jnp.float32))
        tf = (jax.random.uniform(k2, shape) > 0.5).astype(jnp.float32)
        xv = xf.astype(dtype)
        tv = tf.astype(dtype)
        kwargs = {"min_pallas_elements": 0} if force_pallas else {}
        res = jax.block_until_ready(dice_coeff(xv, tv, **kwargs))
        ref = _reference(xv, tv)
        assert jnp.allclose(res, ref, rtol=rtol, atol=1e-6), (label, res, ref)

    cases = [
        # (shape, dtype, force_pallas, rtol, label)
        ((2, 4, 16, 16), jnp.float32, False, 1e-5, "small f32 fast path"),
        ((2, 4, 16, 16), jnp.float32, True, 1e-5, "small f32 pallas (nsplit=2)"),
        ((32768 * 128,), jnp.float32, False, 2e-4, "large f32 (2 splits x 2 blocks)"),
        ((4100 * 128,), jnp.float32, True, 1e-4, "f32 masked partial tail block"),
        ((2, 4, 16, 16), jnp.bfloat16, True, 1e-4, "small bf16 pallas"),
        ((112 * 128,), jnp.bfloat16, True, 1e-4, "bf16 masked partial tail block"),
        ((24576 * 128,), jnp.bfloat16, False, 2e-4, "large bf16 (2-way split)"),
    ]

    for shape, dtype, force, rtol, label in cases:
        key, sub = jax.random.split(key)
        run_case(sub, shape, dtype, force, rtol, label)

    print("KERNEL_OK")
</pallas_src>

<mosaic_0001>
module attributes {stable_mosaic.version = 11 : i64} {
  func.func @kernel(%arg0: i32, %arg1: i32, %arg2: memref<8x128xf32, #tpu.memory_space<vmem>>, %arg3: memref<8x128xf32, #tpu.memory_space<vmem>>, %arg4: memref<1x2x8x128xf32, #tpu.memory_space<vmem>>) attributes {dimension_semantics = [#tpu.dimension_semantics<parallel>, #tpu.dimension_semantics<arbitrary>], iteration_bounds = array<i64: 2, 1>, scalar_prefetch = 0 : i64, scratch_operands = 0 : i64, tpu.core_type = #tpu.core_type<tc>, window_params = [{transform_indices = @transform_0, window_bounds = array<i64: 8, 128>}, {transform_indices = @transform_1, window_bounds = array<i64: 8, 128>}, {transform_indices = @transform_2, window_bounds = array<i64: 1, 2, 8, 128>}]} {
    %c0_i32 = arith.constant 0 : i32
    %0 = arith.cmpi eq, %arg1, %c0_i32 : i32
    %1 = arith.extui %0 : i1 to i32
    %c0_i32_0 = arith.constant 0 : i32
    %2 = arith.cmpi ne, %1, %c0_i32_0 : i32
    scf.if %2 {
      %cst_20 = arith.constant 0.000000e+00 : f32
      %25 = vector.broadcast %cst_20 : f32 to vector<2x8x128xf32>
      %c0_21 = arith.constant 0 : index
      %c0_22 = arith.constant 0 : index
      %c0_23 = arith.constant 0 : index
      %c0_24 = arith.constant 0 : index
      %26 = vector.load %arg4[%c0_21, %c0_22, %c0_23, %c0_24] : memref<1x2x8x128xf32, #tpu.memory_space<vmem>>, vector<1x2x8x128xf32>
      %27 = vector.shape_cast %26 : vector<1x2x8x128xf32> to vector<2x8x128xf32>
      %28 = vector.shape_cast %25 : vector<2x8x128xf32> to vector<1x2x8x128xf32>
      tpu.vector_store %arg4[%c0_21, %c0_22, %c0_23, %c0_24], %28 {strides = array<i32>} : memref<1x2x8x128xf32, #tpu.memory_space<vmem>>, vector<1x2x8x128xf32>,
    } else {
    }
    %c0 = arith.constant 0 : index
    %c0_1 = arith.constant 0 : index
    %3 = vector.load %arg2[%c0, %c0_1] : memref<8x128xf32, #tpu.memory_space<vmem>>, vector<8x128xf32>
    %c0_2 = arith.constant 0 : index
    %c0_3 = arith.constant 0 : index
    %4 = vector.load %arg3[%c0_2, %c0_3] : memref<8x128xf32, #tpu.memory_space<vmem>>, vector<8x128xf32>
    %5 = vector.shape_cast %3 : vector<8x128xf32> to vector<1x8x128xf32>
    %6 = vector.shape_cast %4 : vector<8x128xf32> to vector<1x8x128xf32>
    %c0_4 = arith.constant 0 : index
    %c0_5 = arith.constant 0 : index
    %c0_6 = arith.constant 0 : index
    %c0_7 = arith.constant 0 : index
    %7 = vector.load %arg4[%c0_4, %c0_5, %c0_6, %c0_7] : memref<1x2x8x128xf32, #tpu.memory_space<vmem>>, vector<1x1x8x128xf32>
    %8 = vector.shape_cast %7 : vector<1x1x8x128xf32> to vector<8x128xf32>
    %9 = arith.mulf %5, %6 : vector<1x8x128xf32>
    %cst = arith.constant dense<0.000000e+00> : vector<8x128xf32>
    %10 = vector.multi_reduction <add>, %9, %cst [0] : vector<1x8x128xf32> to vector<8x128xf32>
    %11 = arith.addf %8, %10 : vector<8x128xf32>
    %c0_8 = arith.constant 0 : index
    %c0_9 = arith.constant 0 : index
    %c0_10 = arith.constant 0 : index
    %c0_11 = arith.constant 0 : index
    %12 = vector.load %arg4[%c0_8, %c0_9, %c0_10, %c0_11] : memref<1x2x8x128xf32, #tpu.memory_space<vmem>>, vector<1x1x8x128xf32>
    %13 = vector.shape_cast %12 : vector<1x1x8x128xf32> to vector<8x128xf32>
    %14 = vector.shape_cast %11 : vector<8x128xf32> to vector<1x1x8x128xf32>
    tpu.vector_store %arg4[%c0_8, %c0_9, %c0_10, %c0_11], %14 {strides = array<i32>} : memref<1x2x8x128xf32, #tpu.memory_space<vmem>>, vector<1x1x8x128xf32>,
    %c0_12 = arith.constant 0 : index
    %c1 = arith.constant 1 : index
    %c0_13 = arith.constant 0 : index
    %c0_14 = arith.constant 0 : index
    %15 = vector.load %arg4[%c0_12, %c1, %c0_13, %c0_14] : memref<1x2x8x128xf32, #tpu.memory_space<vmem>>, vector<1x1x8x128xf32>
    %16 = vector.shape_cast %15 : vector<1x1x8x128xf32> to vector<8x128xf32>
    %17 = arith.mulf %5, %5 : vector<1x8x128xf32>
    %18 = arith.mulf %6, %6 : vector<1x8x128xf32>
    %19 = arith.addf %17, %18 : vector<1x8x128xf32>
    %cst_15 = arith.constant dense<0.000000e+00> : vector<8x128xf32>
    %20 = vector.multi_reduction <add>, %19, %cst_15 [0] : vector<1x8x128xf32> to vector<8x128xf32>
    %21 = arith.addf %16, %20 : vector<8x128xf32>
    %c0_16 = arith.constant 0 : index
    %c1_17 = arith.constant 1 : index
    %c0_18 = arith.constant 0 : index
    %c0_19 = arith.constant 0 : index
    %22 = vector.load %arg4[%c0_16, %c1_17, %c0_18, %c0_19] : memref<1x2x8x128xf32, #tpu.memory_space<vmem>>, vector<1x1x8x128xf32>
    %23 = vector.shape_cast %22 : vector<1x1x8x128xf32> to vector<8x128xf32>
    %24 = vector.shape_cast %21 : vector<8x128xf32> to vector<1x1x8x128xf32>
    tpu.vector_store %arg4[%c0_16, %c1_17, %c0_18, %c0_19], %24 {strides = array<i32>} : memref<1x2x8x128xf32, #tpu.memory_space<vmem>>, vector<1x1x8x128xf32>,
    return
  }
  func.func @transform_0(%arg0: i32, %arg1: i32) -> (i32, i32) {
    %c1_i32 = arith.constant 1 : i32
    %0 = arith.muli %arg0, %c1_i32 : i32
    %1 = arith.addi %0, %arg1 : i32
    %c0_i32 = arith.constant 0 : i32
    %c0_i32_0 = arith.constant 0 : i32
    return %1, %c0_i32 : i32, i32
  }
  func.func @transform_1(%arg0: i32, %arg1: i32) -> (i32, i32) {
    %c1_i32 = arith.constant 1 : i32
    %0 = arith.muli %arg0, %c1_i32 : i32
    %1 = arith.addi %0, %arg1 : i32
    %c0_i32 = arith.constant 0 : i32
    %c0_i32_0 = arith.constant 0 : i32
    return %1, %c0_i32 : i32, i32
  }
  func.func @transform_2(%arg0: i32, %arg1: i32) -> (i32, i32, i32, i32) {
    %c0_i32 = arith.constant 0 : i32
    %c0_i32_0 = arith.constant 0 : i32
    %c0_i32_1 = arith.constant 0 : i32
    %c0_i32_2 = arith.constant 0 : i32
    return %arg0, %c0_i32, %c0_i32_0, %c0_i32_1 : i32, i32, i32, i32
  }
}

</mosaic_0001>

<llo_original>
// kernel: tpu_custom_call.1
$region0: #{tpu_custom_call.1}
  #allocation0 [shape = 'u32[]', space=smem, size = 0x4, offset = 0x4, fixed_abs, tag = 'smem constant byte address 0x4 - core index']
  #allocation1 [shape = 'u32[144,128]{1,0:T(1,128)}', space=vmem, size = 0x12000, scoped, tag = 'internal scratch']
  %s0 = inlined_call_operand.hbm [shape: f32[16,128], index: 0, kind: input, shape index: {}]
  %s1 = inlined_call_operand.hbm [shape: f32[16,128], index: 1, kind: input, shape index: {}]
  %s2 = inlined_call_operand.hbm [shape: f32[2,2,8,128], index: 2, kind: output, shape index: {}]
  %s3 = sld [smem:[#allocation0]]
  $region53: #{tpu_custom_call.1} parent=0
    _
  %s5 = ssub.s32 1, %s3
  %s6 = scalar_select 0, %s5, %s3
  $region1: #{tpu_custom_call.1} parent=0
    #allocation2 [shape = 'u8[8192]{0}', space=vmem, size = 0x2000, scoped, tag = 'input window, operand 0']
    #allocation3 [shape = 's32[2]{0}', space=sflag, size = 0x8, scoped, tag = 'scoped memory for tpu_custom_call.1']
    #allocation4 [shape = 's32[2]{0}', space=sflag, size = 0x8, scoped, tag = 'scoped memory for tpu_custom_call.1']
    #allocation5 [shape = 'u8[8192]{0}', space=vmem, size = 0x2000, scoped, tag = 'input window, operand 1']
    #allocation6 [shape = 's32[2]{0}', space=sflag, size = 0x8, scoped, tag = 'scoped memory for tpu_custom_call.1']
    #allocation7 [shape = 'u8[16384]{0}', space=vmem, size = 0x4000, scoped, tag = 'output window, operand 0']
    %7 = vsyncpa [#allocation3], 0
    %s8 = scalar_lea.sflag [#allocation3], 1
    %9 = vsyncpa %s8, 0
    %10 = vsyncpa [#allocation6], 0
    %s11 = scalar_lea.sflag [#allocation6], 1
    %12 = vsyncpa %s11, 0
    %13 = vsyncpa [#allocation4], 0
    %s14 = scalar_lea.sflag [#allocation4], 1
    %15 = vsyncpa %s14, 0
    loop: start=0, step=1, limit=4
    $region2: #{tpu_custom_call.1} parent=1 // loop_pre_header
      _
    $region3: #{tpu_custom_call.1} parent=1 // loop_header
      %s17 = sphi 0, %s21
      %p18 = scmp.ge.s32.totalorder %s17, 4
      %s24 = sphi 0, %s36
      %s25 = sphi 0, %s32
      %s26 = sphi 0, %s24
      %s27 = sphi 0, %s25
      %s28 = sphi 0, %s26
      %s29 = sphi 0, %s27
      %s41 = sphi 0, %s43
      %s44 = sphi 0, %s41
      %s45 = sphi 0, %s44
      %s61 = sphi 0, %s45
      %s69 = sphi 0, %s71
      %s72 = sphi 0, %s69
      %s73 = sphi 0, %s72
      %s89 = sphi 0, %s73
      %s95 = sphi 0, %s97
      %s98 = sphi 0, %s95
      %s99 = sphi 0, %s98
      %s115 = sphi 0, %s99
    $region4: #{tpu_custom_call.1} parent=1 // loop_header_branch
      %20 = sbr.rel (%p18) target = $region8
    $region5: #{tpu_custom_call.1} parent=1 // loop_body
      %s22 = ssub.s32 %s17, 1
      %s23 = ssub.s32 %s17, 2
      %s30 = sadd.s32 1, %s25
      %p31 = scmp.ge.s32.totalorder %s30, 1
      %s32 = scalar_select %p31, 0, %s30
      %s33 = sadd.s32 1, %s24
      %s34 = scalar_select %p31, %s33, %s24
      %p35 = scmp.ge.s32.totalorder %s34, 2
      %s36 = scalar_select %p35, 0, %s34
      %s37 = sadd.s32 %s24, %s25
      %s38 = sadd.s32 %s36, %s32
      %s39 = ssub.s32 %s37, %s38
      %p40 = scmp.eq.s32.totalorder %s39, 0
      %s42 = sadd.s32 %s41, 1
      %s43 = scalar_select %p40, %s41, %s42
      %p46 = pneg %p40
      %p47 = scmp.eq.s32.totalorder %s17, 1
      %p48 = por %p46, %p47
      %p49 = scmp.ne.s32.totalorder %s41, %s44
      %p50 = scmp.eq.s32.totalorder %s17, 0
      %p51 = por %p49, %p50
      %p52 = scmp.ne.s32.totalorder %s41, %s44
      %p53 = scmp.eq.s32.totalorder %s22, 1
      %p54 = por %p52, %p53
      %p55 = scmp.ne.s32.totalorder %s44, %s45
      %p56 = scmp.eq.s32.totalorder %s22, 0
      %p57 = por %p55, %p56
      %p58 = scmp.ne.s32.totalorder %s44, %s45
      %p59 = scmp.eq.s32.totalorder %s23, 1
      %p60 = por %p58, %p59
      %p62 = scmp.ne.s32.totalorder %s45, %s61
      %p63 = scmp.eq.s32.totalorder %s23, 0
      %p64 = por %p62, %p63
      %s65 = sadd.s32 %s24, %s25
      %s66 = sadd.s32 %s36, %s32
      %s67 = ssub.s32 %s65, %s66
      %p68 = scmp.eq.s32.totalorder %s67, 0
      %s70 = sadd.s32 %s69, 1
      %s71 = scalar_select %p68, %s69, %s70
      %p74 = pneg %p68
      %p75 = scmp.eq.s32.totalorder %s17, 1
      %p76 = por %p74, %p75
      %p77 = scmp.ne.s32.totalorder %s69, %s72
      %p78 = scmp.eq.s32.totalorder %s17, 0
      %p79 = por %p77, %p78
      %p80 = scmp.ne.s32.totalorder %s69, %s72
      %p81 = scmp.eq.s32.totalorder %s22, 1
      %p82 = por %p80, %p81
      %p83 = scmp.ne.s32.totalorder %s72, %s73
      %p84 = scmp.eq.s32.totalorder %s22, 0
      %p85 = por %p83, %p84
      %p86 = scmp.ne.s32.totalorder %s72, %s73
      %p87 = scmp.eq.s32.totalorder %s23, 1
      %p88 = por %p86, %p87
      %p90 = scmp.ne.s32.totalorder %s73, %s89
      %p91 = scmp.eq.s32.totalorder %s23, 0
      %p92 = por %p90, %p91
      %s93 = ssub.s32 %s24, %s36
      %p94 = scmp.eq.s32.totalorder %s93, 0
      %s96 = sadd.s32 %s95, 1
      %s97 = scalar_select %p94, %s95, %s96
      %p100 = pneg %p94
      %p101 = scmp.eq.s32.totalorder %s17, 1
      %p102 = por %p100, %p101
      %p103 = scmp.ne.s32.totalorder %s95, %s98
      %p104 = scmp.eq.s32.totalorder %s17, 0
      %p105 = por %p103, %p104
      %p106 = scmp.ne.s32.totalorder %s95, %s98
      %p107 = scmp.eq.s32.totalorder %s22, 1
      %p108 = por %p106, %p107
      %p109 = scmp.ne.s32.totalorder %s98, %s99
      %p110 = scmp.eq.s32.totalorder %s22, 0
      %p111 = por %p109, %p110
      %p112 = scmp.ne.s32.totalorder %s98, %s99
      %p113 = scmp.eq.s32.totalorder %s23, 1
      %p114 = por %p112, %p113
      %p116 = scmp.ne.s32.totalorder %s99, %s115
      %p117 = scmp.eq.s32.totalorder %s23, 0
      %p118 = por %p116, %p117
      %p119 = scmp.le.s32.totalorder 1, %s17
      %p120 = scmp.lt.s32.totalorder %s17, 3
      %p121 = pnand %p119, %p120
      %p122 = pneg %p121
      // Predicated region
      $region9: #{tpu_custom_call.1} parent=5 // pred_check
        _
      $region10: #{tpu_custom_call.1} parent=5 // pred_check_branch
        %124 = sbr.rel (%p121) target = $region12
      $region11: #{tpu_custom_call.1} parent=5 // pred_region
        %s125 = ssub.s32 %s17, 1
      $region12: #{tpu_custom_call.1} parent=5 // pred_fallthru
        _
      %p126 = scmp.lt.s32.totalorder %s17, 2
      // Predicated region
      $region13: #{tpu_custom_call.1} parent=5 // pred_check
        %p127 = pneg %p126
      $region14: #{tpu_custom_call.1} parent=5 // pred_check_branch
        %129 = sbr.rel (%p127) target = $region16
      $region15: #{tpu_custom_call.1} parent=5 // pred_region
        // Predicated region
        $region17: #{tpu_custom_call.1} parent=15 // pred_check
          %p130 = pneg %p51
        $region18: #{tpu_custom_call.1} parent=15 // pred_check_branch
          %132 = sbr.rel (%p130) target = $region20
        $region19: #{tpu_custom_call.1} parent=15 // pred_region
          %s133 = sand.u32 %s41, 1
          %s134 = scalar_lea.sflag [#allocation3], %s133
          %s135 = sand.u32 %s41, 1
          %s136 = smul.addr %s135, 8
          %s137 = scalar_lea.vmem [#allocation2], %s136
          %s138 = sadd.s32 %s24, %s25
          %s140 = ssub.s32 128, 128
          %141 = vsyncadd %s134, %s140
          %s142 = smul.addr %s138, 128
          %s143 = scalar_lea.hbm %s0, %s142
          %s145 = sshll.u32 %s137, 4
          %s146 = int_to_ptr.vmem [resolvable:$true] %s145
          %148 = dma.hbm_to_vmem [thread:$0]  %s143, 128, %s146, %s134
        $region20: #{tpu_custom_call.1} parent=15 // pred_fallthru
          _
        // Predicated region
        $region21: #{tpu_custom_call.1} parent=15 // pred_check
          %p149 = pneg %p79
        $region22: #{tpu_custom_call.1} parent=15 // pred_check_branch
          %151 = sbr.rel (%p149) target = $region24
        $region23: #{tpu_custom_call.1} parent=15 // pred_region
          %s152 = sand.u32 %s69, 1
          %s153 = scalar_lea.sflag [#allocation6], %s152
          %s154 = sand.u32 %s69, 1
          %s155 = smul.addr %s154, 8
          %s156 = scalar_lea.vmem [#allocation5], %s155
          %s157 = sadd.s32 %s24, %s25
          %s159 = ssub.s32 128, 128
          %160 = vsyncadd %s153, %s159
          %s161 = smul.addr %s157, 128
          %s162 = scalar_lea.hbm %s1, %s161
          %s164 = sshll.u32 %s156, 4
          %s165 = int_to_ptr.vmem [resolvable:$true] %s164
          %167 = dma.hbm_to_vmem [thread:$0]  %s162, 128, %s165, %s153
        $region24: #{tpu_custom_call.1} parent=15 // pred_fallthru
          _
      $region16: #{tpu_custom_call.1} parent=5 // pred_fallthru
        _
      %p168 = scmp.le.s32.totalorder 1, %s17
      %p169 = scmp.lt.s32.totalorder %s17, 3
      %p170 = pnand %p168, %p169
      %p171 = pneg %p170
      // Predicated region
      $region25: #{tpu_custom_call.1} parent=5 // pred_check
        _
      $region26: #{tpu_custom_call.1} parent=5 // pred_check_branch
        %173 = sbr.rel (%p170) target = $region28
      $region27: #{tpu_custom_call.1} parent=5 // pred_region
        %s174 = ssub.s32 %s17, 1
        %s175 = sand.u32 %s44, 1
        %s176 = scalar_lea.sflag [#allocation3], %s175
        %s177 = sand.u32 %s44, 1
        %s178 = smul.addr %s177, 8
        %s179 = scalar_lea.vmem [#allocation2], %s178
        // Predicated region
        $region29: #{tpu_custom_call.1} parent=27 // pred_check
          %p180 = pneg %p57
        $region30: #{tpu_custom_call.1} parent=27 // pred_check_branch
          %182 = sbr.rel (%p180) target = $region32
        $region31: #{tpu_custom_call.1} parent=27 // pred_region
          %183 = dma.done %s176, 128
        $region32: #{tpu_custom_call.1} parent=27 // pred_fallthru
          _
        %s184 = sand.u32 %s72, 1
        %s185 = scalar_lea.sflag [#allocation6], %s184
        %s186 = sand.u32 %s72, 1
        %s187 = smul.addr %s186, 8
        %s188 = scalar_lea.vmem [#allocation5], %s187
        // Predicated region
        $region33: #{tpu_custom_call.1} parent=27 // pred_check
          %p189 = pneg %p85
        $region34: #{tpu_custom_call.1} parent=27 // pred_check_branch
          %191 = sbr.rel (%p189) target = $region36
        $region35: #{tpu_custom_call.1} parent=27 // pred_region
          %192 = dma.done %s185, 128
        $region36: #{tpu_custom_call.1} parent=27 // pred_fallthru
          _
        %s193 = sand.u32 %s44, 1
        %s194 = scalar_lea.sflag [#allocation3], %s193
        %s195 = sand.u32 %s44, 1
        %s196 = smul.addr %s195, 8
        %s197 = scalar_lea.vmem [#allocation2], %s196
        %p198 = pneg %p57
        %p199 = pneg %p54
        %s200 = sand.u32 %s72, 1
        %s201 = scalar_lea.sflag [#allocation6], %s200
        %s202 = sand.u32 %s72, 1
        %s203 = smul.addr %s202, 8
        %s204 = scalar_lea.vmem [#allocation5], %s203
        %p205 = pneg %p85
        %p206 = pneg %p82
        %p207 = pneg %p111
        %p208 = pneg %p108
        %s209 = sand.u32 %s98, 1
        %s210 = scalar_lea.sflag [#allocation4], %s209
        %s211 = sand.u32 %s98, 1
        %s212 = smul.addr %s211, 16
        %s213 = scalar_lea.vmem [#allocation7], %s212
        %s214 = sadd.s32 %s26, %s27
        %s215 = sadd.s32 %s26, %s27
        %p216 = scmp.eq.s32.totalorder %s27, 0
        // Predicated region
        $region37: #{tpu_custom_call.1} parent=27 // pred_check
          %p217 = pneg %p216
        $region38: #{tpu_custom_call.1} parent=27 // pred_check_branch
          %219 = sbr.rel (%p217) target = $region40
        $region39: #{tpu_custom_call.1} parent=27 // pred_region
          %220 = vst [vmem:[%s213] sm:$0xff] 0.0
          %221 = vst [vmem:[%s213 + $0x8] sm:$0xff] 0.0
        $region40: #{tpu_custom_call.1} parent=27 // pred_fallthru
          _
        %v222 = vld [vmem:[%s179] sm:$0xff]
        %v223 = vld [vmem:[%s188] sm:$0xff]
        %v224 = vld [vmem:[%s213] sm:$0xff]
        %v225 = vmul.f32 %v222, %v223
        %v226 = vadd.f32 %v225, 0.0
        %v227 = vadd.f32 %v224, %v226
        %228 = vst [vmem:[%s213] sm:$0xff] %v227
        %s229 = scalar_lea.vmem %s213, 8 [#allocation7]
        %v230 = vld [vmem:[%s229] sm:$0xff]
        %v231 = vmul.f32 %v222, %v222
        %v232 = vmul.f32 %v223, %v223
        %v233 = vadd.f32 %v231, %v232
        %v234 = vadd.f32 %v233, 0.0
        %v235 = vadd.f32 %v230, %v234
        %236 = vst [vmem:[%s229] sm:$0xff] %v235
        %s237 = sand.u32 %s98, 1
        %s238 = scalar_lea.sflag [#allocation4], %s237
        %s239 = sand.u32 %s98, 1
        %s240 = smul.addr %s239, 16
        %s241 = scalar_lea.vmem [#allocation7], %s240
        // Predicated region
        $region41: #{tpu_custom_call.1} parent=27 // pred_check
          %p242 = pneg %p108
        $region42: #{tpu_custom_call.1} parent=27 // pred_check_branch
          %244 = sbr.rel (%p242) target = $region44
        $region43: #{tpu_custom_call.1} parent=27 // pred_region
          %s246 = ssub.s32 256, 256
          %247 = vsyncadd %s238, %s246
          %s248 = smul.addr %s26, 2
          %s249 = smul.addr %s248, 128
          %s250 = scalar_lea.hbm %s2, %s249
          %s251 = sshll.u32 %s241, 4
          %s252 = int_to_ptr.vmem [resolvable:$true] %s251
          %257 = dma.vmem_to_hbm [thread:$0]  %s252, 256, %s250, %s238, 128, 128, 8
        $region44: #{tpu_custom_call.1} parent=27 // pred_fallthru
          _
      $region28: #{tpu_custom_call.1} parent=5 // pred_fallthru
        _
      %p258 = scmp.le.s32.totalorder 2, %s17
      // Predicated region
      $region45: #{tpu_custom_call.1} parent=5 // pred_check
        %p259 = pneg %p258
      $region46: #{tpu_custom_call.1} parent=5 // pred_check_branch
        %261 = sbr.rel (%p259) target = $region48
      $region47: #{tpu_custom_call.1} parent=5 // pred_region
        %s262 = ssub.s32 %s17, 2
        // Predicated region
        $region49: #{tpu_custom_call.1} parent=47 // pred_check
          %p263 = pneg %p114
        $region50: #{tpu_custom_call.1} parent=47 // pred_check_branch
          %265 = sbr.rel (%p263) target = $region52
        $region51: #{tpu_custom_call.1} parent=47 // pred_region
          %s266 = sand.u32 %s99, 1
          %s267 = scalar_lea.sflag [#allocation4], %s266
          %s268 = sand.u32 %s99, 1
          %s269 = smul.addr %s268, 16
          %s270 = scalar_lea.vmem [#allocation7], %s269
          %271 = dma.done %s267, 256
        $region52: #{tpu_custom_call.1} parent=47 // pred_fallthru
          _
      $region48: #{tpu_custom_call.1} parent=5 // pred_fallthru
        _
    $region6: #{tpu_custom_call.1} parent=1 // loop_footer
      %s21 = sadd.s32 1, %s17
    $region7: #{tpu_custom_call.1} parent=1 // loop_footer_branch
      %16 = sbr.rel target = $region3
    $region8: #{tpu_custom_call.1} parent=1 // loop_exit
      _
    %272 = vsyncpa [#allocation3], 1
    %s273 = scalar_lea.sflag [#allocation3], 1
    %274 = vsyncpa %s273, 1
    %275 = vsyncpa [#allocation6], 1
    %s276 = scalar_lea.sflag [#allocation6], 1
    %277 = vsyncpa %s276, 1
    %278 = vsyncpa [#allocation4], 1
    %s279 = scalar_lea.sflag [#allocation4], 1
    %280 = vsyncpa %s279, 1

</llo_original>
